<compile_context>
chip_gen: v7x
topology: tpu7x:2x2x1
jax: 0.10.0
libtpu: 0.0.40
codegen_flags: <defaults>
</compile_context>

<pallas_src>
import functools

import jax
import jax.numpy as jnp
from jax import lax
from jax.experimental import pallas as pl
from jax.experimental.pallas import tpu as pltpu


def _expand_norm_kernel(x_ref, w_ref, g_ref, gt_ref, gamma_ref, beta_ref,
                        o_ref, *, inv_group, eps):
    """Fused Linear expand + grouped LayerNorm on a tile of rows.

    x_ref:     (TM, C)   input rows (flattened b,h,w)
    w_ref:     (C, E)    expand weight (Linear weight transposed), E = 4*C
    g_ref:     (E, NG)   group indicator (column g marks channels of group g)
    gt_ref:    (NG, E)   its transpose (broadcast groups back to channels)
    gamma_ref: (1, E)    LayerNorm weight, tiled over the NG groups
    beta_ref:  (1, E)    LayerNorm bias,  tiled over the NG groups
    o_ref:     (TM, E)   normalized expanded rows (pre pixel-shuffle)
    """
    # Main expand matmul (MXU), f32 accumulation.
    y = jnp.dot(x_ref[...], w_ref[...], preferred_element_type=jnp.float32)

    g = g_ref[...]
    gt = gt_ref[...]

    # Per-group mean, broadcast back to all E channels (tiny MXU matmuls).
    s1 = jnp.dot(y, g, preferred_element_type=jnp.float32)          # (TM, NG)
    mu_b = jnp.dot(s1 * inv_group, gt, preferred_element_type=jnp.float32)

    d = y - mu_b
    s2 = jnp.dot(d * d, g, preferred_element_type=jnp.float32)      # (TM, NG)
    inv = lax.rsqrt(s2 * inv_group + eps)                            # EUP
    inv_b = jnp.dot(inv, gt, preferred_element_type=jnp.float32)    # (TM, E)

    o_ref[...] = (d * inv_b * gamma_ref[...] + beta_ref[...]).astype(o_ref.dtype)


def final_patch_expand_2d(x, expand_weight, norm_weight, norm_bias,
                          dim_scale=4, eps=1e-5, block_m=1024):
    """x: (B, H, W, C).  expand_weight: (dim_scale*C, C) (PyTorch Linear layout).
    norm_weight / norm_bias: (C // dim_scale,).  Returns (B, H*s, W*s, C//s)."""
    B, H, W, C = x.shape
    assert C % dim_scale == 0
    E = dim_scale * C               # expanded channels = p1*p2*c
    c_out = C // dim_scale          # LayerNorm dim after pixel shuffle
    ng = dim_scale * dim_scale      # number of contiguous groups inside E

    # Resident small operands.
    wmat = jnp.asarray(expand_weight, jnp.float32).T                     # (C, E)
    g = jnp.repeat(jnp.eye(ng, dtype=jnp.float32), c_out, axis=0)        # (E, NG)
    gt = jnp.transpose(g)                                                # (NG, E)
    gamma_t = jnp.tile(jnp.asarray(norm_weight, jnp.float32), ng).reshape(1, E)
    beta_t = jnp.tile(jnp.asarray(norm_bias, jnp.float32), ng).reshape(1, E)

    # Flatten rows: free reshape (channels-last already), no transpose pass.
    M = B * H * W
    xf = x.reshape(M, C)

    tm = min(block_m, ((M + 7) // 8) * 8)          # sublane-aligned tile
    m_pad = pl.cdiv(M, tm) * tm
    if m_pad != M:
        xf = jnp.pad(xf, ((0, m_pad - M), (0, 0)))

    grid = (m_pad // tm,)
    flops = 2 * m_pad * C * E + 4 * 2 * m_pad * E * ng
    bytes_accessed = 4 * (m_pad * C + m_pad * E + C * E + 2 * E * ng + 2 * E)

    z = pl.pallas_call(
        functools.partial(_expand_norm_kernel,
                          inv_group=1.0 / float(c_out), eps=float(eps)),
        out_shape=jax.ShapeDtypeStruct((m_pad, E), x.dtype),
        grid=grid,
        in_specs=[
            pl.BlockSpec((tm, C), lambda i: (i, 0)),   # x rows (tiled over M)
            pl.BlockSpec((C, E), lambda i: (0, 0)),    # expand weight (resident)
            pl.BlockSpec((E, ng), lambda i: (0, 0)),   # group indicator
            pl.BlockSpec((ng, E), lambda i: (0, 0)),   # its transpose
            pl.BlockSpec((1, E), lambda i: (0, 0)),    # gamma (tiled)
            pl.BlockSpec((1, E), lambda i: (0, 0)),    # beta  (tiled)
        ],
        out_specs=pl.BlockSpec((tm, E), lambda i: (i, 0)),  # lane-dense (E=128)
        compiler_params=pltpu.CompilerParams(
            dimension_semantics=("parallel",)),
        cost_estimate=pl.CostEstimate(
            flops=int(flops),
            transcendentals=int(m_pad * ng),
            bytes_accessed=int(bytes_accessed)),
    )(xf, wmat, g, gt, gamma_t, beta_t)

    # Pixel shuffle: 'b h w (p1 p2 c) -> b (h p1) (w p2) c' (layout plumbing).
    z = z[:M].reshape(B, H, W, dim_scale, dim_scale, c_out)
    out = jnp.transpose(z, (0, 1, 3, 2, 4, 5)).reshape(
        B, H * dim_scale, W * dim_scale, c_out)
    return out


if __name__ == "__main__":
    # Small deterministic example: B=2, H=W=8, dim=32, dim_scale=4.
    B, H, W, dim = 2, 8, 8, 32
    dim_scale = 4
    c_out = dim // dim_scale

    key = jax.random.PRNGKey(0)
    kx, kw, kg, kb = jax.random.split(key, 4)
    x = jax.random.normal(kx, (B, H, W, dim), dtype=jnp.float32)
    expand_w = jax.random.normal(kw, (dim_scale * dim, dim), dtype=jnp.float32) * 0.05
    norm_w = 1.0 + 0.1 * jax.random.normal(kg, (c_out,), dtype=jnp.float32)
    norm_b = 0.05 * jax.random.normal(kb, (c_out,), dtype=jnp.float32)

    out = final_patch_expand_2d(x, expand_w, norm_w, norm_b, dim_scale=dim_scale)
    out = jax.block_until_ready(out)

    # Pure-JAX reference (Linear -> rearrange -> LayerNorm), matching PyTorch.
    y = jnp.einsum('bhwc,ec->bhwe', x, expand_w,
                   precision=lax.Precision.HIGHEST)
    y = y.reshape(B, H, W, dim_scale, dim_scale, c_out)
    y = jnp.transpose(y, (0, 1, 3, 2, 4, 5)).reshape(
        B, H * dim_scale, W * dim_scale, c_out)
    mu = jnp.mean(y, axis=-1, keepdims=True)
    var = jnp.mean((y - mu) ** 2, axis=-1, keepdims=True)
    ref = (y - mu) / jnp.sqrt(var + 1e-5) * norm_w + norm_b

    assert out.shape == (B, H * dim_scale, W * dim_scale, c_out), out.shape
    max_err = float(jnp.max(jnp.abs(out - ref)))
    assert jnp.allclose(out, ref, atol=5e-3, rtol=5e-3), f"mismatch, max_err={max_err}"

    print("KERNEL_OK")
</pallas_src>

<mosaic_0001>
module attributes {stable_mosaic.version = 11 : i64} {
  func.func @_expand_norm_kernel(%arg0: i32, %arg1: memref<128x32xf32, #tpu.memory_space<vmem>>, %arg2: memref<32x128xf32, #tpu.memory_space<vmem>>, %arg3: memref<128x16xf32, #tpu.memory_space<vmem>>, %arg4: memref<16x128xf32, #tpu.memory_space<vmem>>, %arg5: memref<1x128xf32, #tpu.memory_space<vmem>>, %arg6: memref<1x128xf32, #tpu.memory_space<vmem>>, %arg7: memref<128x128xf32, #tpu.memory_space<vmem>>) attributes {dimension_semantics = [#tpu.dimension_semantics<parallel>], iteration_bounds = array<i64: 1>, scalar_prefetch = 0 : i64, scratch_operands = 0 : i64, tpu.core_type = #tpu.core_type<tc>, window_params = [{transform_indices = @transform_0, window_bounds = array<i64: 128, 32>}, {pipeline_mode = #tpu.pipeline_mode<synchronous>, transform_indices = @transform_1, window_bounds = array<i64: 32, 128>}, {pipeline_mode = #tpu.pipeline_mode<synchronous>, transform_indices = @transform_2, window_bounds = array<i64: 128, 16>}, {pipeline_mode = #tpu.pipeline_mode<synchronous>, transform_indices = @transform_3, window_bounds = array<i64: 16, 128>}, {pipeline_mode = #tpu.pipeline_mode<synchronous>, transform_indices = @transform_4, window_bounds = array<i64: 1, 128>}, {pipeline_mode = #tpu.pipeline_mode<synchronous>, transform_indices = @transform_5, window_bounds = array<i64: 1, 128>}, {transform_indices = @transform_6, window_bounds = array<i64: 128, 128>}]} {
    %c0 = arith.constant 0 : index
    %c0_0 = arith.constant 0 : index
    %0 = vector.load %arg1[%c0, %c0_0] : memref<128x32xf32, #tpu.memory_space<vmem>>, vector<128x32xf32>
    %c0_1 = arith.constant 0 : index
    %c0_2 = arith.constant 0 : index
    %1 = vector.load %arg2[%c0_1, %c0_2] : memref<32x128xf32, #tpu.memory_space<vmem>>, vector<32x128xf32>
    %cst = arith.constant dense<0.000000e+00> : vector<128x128xf32>
    %2 = tpu.matmul %0, %1, %cst {dimension_numbers = #tpu.dot_dimension_numbers<[1], [0], [0], [1], [0, 0, 1, 1], [], []>} : vector<128x32xf32>, vector<32x128xf32>, vector<128x128xf32> -> vector<128x128xf32>
    %c0_3 = arith.constant 0 : index
    %c0_4 = arith.constant 0 : index
    %3 = vector.load %arg3[%c0_3, %c0_4] : memref<128x16xf32, #tpu.memory_space<vmem>>, vector<128x16xf32>
    %c0_5 = arith.constant 0 : index
    %c0_6 = arith.constant 0 : index
    %4 = vector.load %arg4[%c0_5, %c0_6] : memref<16x128xf32, #tpu.memory_space<vmem>>, vector<16x128xf32>
    %cst_7 = arith.constant dense<0.000000e+00> : vector<128x16xf32>
    %5 = tpu.matmul %2, %3, %cst_7 {dimension_numbers = #tpu.dot_dimension_numbers<[1], [0], [0], [1], [0, 0, 1, 1], [], []>} : vector<128x128xf32>, vector<128x16xf32>, vector<128x16xf32> -> vector<128x16xf32>
    %cst_8 = arith.constant 1.250000e-01 : f32
    %6 = vector.broadcast %cst_8 : f32 to vector<128x16xf32>
    %7 = arith.mulf %5, %6 : vector<128x16xf32>
    %cst_9 = arith.constant dense<0.000000e+00> : vector<128x128xf32>
    %8 = tpu.matmul %7, %4, %cst_9 {dimension_numbers = #tpu.dot_dimension_numbers<[1], [0], [0], [1], [0, 0, 1, 1], [], []>} : vector<128x16xf32>, vector<16x128xf32>, vector<128x128xf32> -> vector<128x128xf32>
    %9 = arith.subf %2, %8 : vector<128x128xf32>
    %10 = arith.mulf %9, %9 : vector<128x128xf32>
    %cst_10 = arith.constant dense<0.000000e+00> : vector<128x16xf32>
    %11 = tpu.matmul %10, %3, %cst_10 {dimension_numbers = #tpu.dot_dimension_numbers<[1], [0], [0], [1], [0, 0, 1, 1], [], []>} : vector<128x128xf32>, vector<128x16xf32>, vector<128x16xf32> -> vector<128x16xf32>
    %cst_11 = arith.constant 1.250000e-01 : f32
    %12 = vector.broadcast %cst_11 : f32 to vector<128x16xf32>
    %13 = arith.mulf %11, %12 : vector<128x16xf32>
    %cst_12 = arith.constant 9.99999974E-6 : f32
    %14 = vector.broadcast %cst_12 : f32 to vector<128x16xf32>
    %15 = arith.addf %13, %14 : vector<128x16xf32>
    %16 = math.rsqrt %15 : vector<128x16xf32>
    %cst_13 = arith.constant dense<0.000000e+00> : vector<128x128xf32>
    %17 = tpu.matmul %16, %4, %cst_13 {dimension_numbers = #tpu.dot_dimension_numbers<[1], [0], [0], [1], [0, 0, 1, 1], [], []>} : vector<128x16xf32>, vector<16x128xf32>, vector<128x128xf32> -> vector<128x128xf32>
    %18 = arith.mulf %9, %17 : vector<128x128xf32>
    %c0_14 = arith.constant 0 : index
    %c0_15 = arith.constant 0 : index
    %19 = vector.load %arg5[%c0_14, %c0_15] : memref<1x128xf32, #tpu.memory_space<vmem>>, vector<1x128xf32>
    %20 = vector.broadcast %19 : vector<1x128xf32> to vector<128x128xf32>
    %21 = arith.mulf %18, %20 : vector<128x128xf32>
    %c0_16 = arith.constant 0 : index
    %c0_17 = arith.constant 0 : index
    %22 = vector.load %arg6[%c0_16, %c0_17] : memref<1x128xf32, #tpu.memory_space<vmem>>, vector<1x128xf32>
    %23 = vector.broadcast %22 : vector<1x128xf32> to vector<128x128xf32>
    %24 = arith.addf %21, %23 : vector<128x128xf32>
    %c0_18 = arith.constant 0 : index
    %c0_19 = arith.constant 0 : index
    %25 = vector.load %arg7[%c0_18, %c0_19] : memref<128x128xf32, #tpu.memory_space<vmem>>, vector<128x128xf32>
    tpu.vector_store %arg7[%c0_18, %c0_19], %24 {strides = array<i32>} : memref<128x128xf32, #tpu.memory_space<vmem>>, vector<128x128xf32>,
    return
  }
  func.func @transform_0(%arg0: i32) -> (i32, i32) {
    %c0_i32 = arith.constant 0 : i32
    %c0_i32_0 = arith.constant 0 : i32
    return %arg0, %c0_i32 : i32, i32
  }
  func.func @transform_1(%arg0: i32) -> (i32, i32) {
    %c0_i32 = arith.constant 0 : i32
    %c0_i32_0 = arith.constant 0 : i32
    %c0_i32_1 = arith.constant 0 : i32
    return %c0_i32, %c0_i32_0 : i32, i32
  }
  func.func @transform_2(%arg0: i32) -> (i32, i32) {
    %c0_i32 = arith.constant 0 : i32
    %c0_i32_0 = arith.constant 0 : i32
    %c0_i32_1 = arith.constant 0 : i32
    return %c0_i32, %c0_i32_0 : i32, i32
  }
  func.func @transform_3(%arg0: i32) -> (i32, i32) {
    %c0_i32 = arith.constant 0 : i32
    %c0_i32_0 = arith.constant 0 : i32
    %c0_i32_1 = arith.constant 0 : i32
    return %c0_i32, %c0_i32_0 : i32, i32
  }
  func.func @transform_4(%arg0: i32) -> (i32, i32) {
    %c0_i32 = arith.constant 0 : i32
    %c0_i32_0 = arith.constant 0 : i32
    %c0_i32_1 = arith.constant 0 : i32
    return %c0_i32, %c0_i32_0 : i32, i32
  }
  func.func @transform_5(%arg0: i32) -> (i32, i32) {
    %c0_i32 = arith.constant 0 : i32
    %c0_i32_0 = arith.constant 0 : i32
    %c0_i32_1 = arith.constant 0 : i32
    return %c0_i32, %c0_i32_0 : i32, i32
  }
  func.func @transform_6(%arg0: i32) -> (i32, i32) {
    %c0_i32 = arith.constant 0 : i32
    %c0_i32_0 = arith.constant 0 : i32
    return %arg0, %c0_i32 : i32, i32
  }
}

</mosaic_0001>

<llo_original>
// kernel: tpu_custom_call.1
$region0: #{tpu_custom_call.1}
  #allocation0 [shape = 'u32[]', space=smem, size = 0x4, offset = 0x4, fixed_abs, tag = 'smem constant byte address 0x4 - core index']
  #allocation1 [shape = 'u32[144,128]{1,0:T(1,128)}', space=vmem, size = 0x12000, scoped, tag = 'internal scratch']
  %s0 = inlined_call_operand.vmem [shape: f32[128,32], index: 0, kind: input, shape index: {}]
  %s1 = inlined_call_operand.vmem [shape: f32[32,128], index: 1, kind: input, shape index: {}]
  %s2 = inlined_call_operand.vmem [shape: f32[128,16], index: 2, kind: input, shape index: {}]
  %s3 = inlined_call_operand.vmem [shape: f32[16,128], index: 3, kind: input, shape index: {}]
  %s4 = inlined_call_operand.vmem [shape: f32[1,128], index: 4, kind: input, shape index: {}]
  %s5 = inlined_call_operand.vmem [shape: f32[1,128], index: 5, kind: input, shape index: {}]
  %s6 = inlined_call_operand.hbm [shape: f32[128,128], index: 6, kind: output, shape index: {}]
  %s7 = sld [smem:[#allocation0]]
  $region34: #{tpu_custom_call.1} parent=0
    _
  %s9 = ssub.s32 1, %s7
  %s10 = scalar_select 0, %s9, %s7
  $region1: #{tpu_custom_call.1} parent=0
    #allocation2 [shape = 'u8[65536]{0}', space=vmem, size = 0x10000, scoped, tag = 'output window, operand 0, single buffered']
    #allocation3 [shape = 's32[1]{0}', space=sflag, size = 0x4, scoped, tag = 'scoped memory for tpu_custom_call.1']
    %11 = vsyncpa [#allocation3], 0
    // Predicated region
    $region2: #{tpu_custom_call.1} parent=1 // pred_check
      _
    $region3: #{tpu_custom_call.1} parent=1 // pred_check_branch
      %13 = sbr.rel (0) target = $region5
    $region4: #{tpu_custom_call.1} parent=1 // pred_region
      _
    $region5: #{tpu_custom_call.1} parent=1 // pred_fallthru
      _
    // Predicated region
    $region6: #{tpu_custom_call.1} parent=1 // pred_check
      _
    $region7: #{tpu_custom_call.1} parent=1 // pred_check_branch
      %15 = sbr.rel (0) target = $region9
    $region8: #{tpu_custom_call.1} parent=1 // pred_region
      _
    $region9: #{tpu_custom_call.1} parent=1 // pred_fallthru
      _
    // Predicated region
    $region10: #{tpu_custom_call.1} parent=1 // pred_check
      _
    $region11: #{tpu_custom_call.1} parent=1 // pred_check_branch
      %17 = sbr.rel (0) target = $region13
    $region12: #{tpu_custom_call.1} parent=1 // pred_region
      _
    $region13: #{tpu_custom_call.1} parent=1 // pred_fallthru
      _
    // Predicated region
    $region14: #{tpu_custom_call.1} parent=1 // pred_check
      _
    $region15: #{tpu_custom_call.1} parent=1 // pred_check_branch
      %19 = sbr.rel (0) target = $region17
    $region16: #{tpu_custom_call.1} parent=1 // pred_region
      _
    $region17: #{tpu_custom_call.1} parent=1 // pred_fallthru
      _
    // Predicated region
    $region18: #{tpu_custom_call.1} parent=1 // pred_check
      _
    $region19: #{tpu_custom_call.1} parent=1 // pred_check_branch
      %21 = sbr.rel (0) target = $region21
    $region20: #{tpu_custom_call.1} parent=1 // pred_region
      _
    $region21: #{tpu_custom_call.1} parent=1 // pred_fallthru
      _
    // Predicated region
    $region22: #{tpu_custom_call.1} parent=1 // pred_check
      _
    $region23: #{tpu_custom_call.1} parent=1 // pred_check_branch
      %23 = sbr.rel (0) target = $region25
    $region24: #{tpu_custom_call.1} parent=1 // pred_region
      _
    $region25: #{tpu_custom_call.1} parent=1 // pred_fallthru
      _
    %v24 = vld [vmem:[%s0] sm:$0xff]
    %v25 = vld [vmem:[%s0 + $0x8] sm:$0xff]
    %v26 = vld [vmem:[%s0 + $0x10] sm:$0xff]
    %v27 = vld [vmem:[%s0 + $0x18] sm:$0xff]
    %v28 = vld [vmem:[%s0 + $0x20] sm:$0xff]
    %v29 = vld [vmem:[%s0 + $0x28] sm:$0xff]
    %v30 = vld [vmem:[%s0 + $0x30] sm:$0xff]
    %v31 = vld [vmem:[%s0 + $0x38] sm:$0xff]
    %v32 = vld [vmem:[%s0 + $0x40] sm:$0xff]
    %v33 = vld [vmem:[%s0 + $0x48] sm:$0xff]
    %v34 = vld [vmem:[%s0 + $0x50] sm:$0xff]
    %v35 = vld [vmem:[%s0 + $0x58] sm:$0xff]
    %v36 = vld [vmem:[%s0 + $0x60] sm:$0xff]
    %v37 = vld [vmem:[%s0 + $0x68] sm:$0xff]
    %v38 = vld [vmem:[%s0 + $0x70] sm:$0xff]
    %v39 = vld [vmem:[%s0 + $0x78] sm:$0xff]
    %v40 = vld [vmem:[%s1] sm:$0xff]
    %v41 = vld [vmem:[%s1 + $0x8] sm:$0xff]
    %v42 = vld [vmem:[%s1 + $0x10] sm:$0xff]
    %v43 = vld [vmem:[%s1 + $0x18] sm:$0xff]
    %vm44 = vcmask 261120
    %v46 = vsel %vm44, %v24, 0
    %v49 = vsel %vm44, %v25, 0
    %v52 = vsel %vm44, %v26, 0
    %v55 = vsel %vm44, %v27, 0
    %v58 = vsel %vm44, %v28, 0
    %v61 = vsel %vm44, %v29, 0
    %v64 = vsel %vm44, %v30, 0
    %v67 = vsel %vm44, %v31, 0
    %v70 = vsel %vm44, %v32, 0
    %v73 = vsel %vm44, %v33, 0
    %v76 = vsel %vm44, %v34, 0
    %v79 = vsel %vm44, %v35, 0
    %v82 = vsel %vm44, %v36, 0
    %v85 = vsel %vm44, %v37, 0
    %v88 = vsel %vm44, %v38, 0
    %v91 = vsel %vm44, %v39, 0
    %93 = vmatprep.subr.mxu0 0.0
    %94 = vmatpush1.msra.mxu0 %v40
    %95 = vmatprep.subr.mxu0 0.0
    %96 = vmatpush1.msra.mxu0 %v41
    %97 = vmatprep.subr.mxu0 0.0
    %98 = vmatpush1.msra.mxu0 %v42
    %99 = vmatprep.subr.mxu0 0.0
    %100 = vmatpush1.msra.mxu0 %v43
    %101 = vmatprep.subr.mxu0 0.0
    %102 = vmatpush1.msra.mxu0 0.0
    %103 = vmatprep.subr.mxu0 0.0
    %104 = vmatpush1.msra.mxu0 0.0
    %105 = vmatprep.subr.mxu0 0.0
    %106 = vmatpush1.msra.mxu0 0.0
    %107 = vmatprep.subr.mxu0 0.0
    %108 = vmatpush1.msra.mxu0 0.0
    %109 = vmatprep.subr.mxu0 0.0
    %110 = vmatpush1.msra.mxu0 0.0
    %111 = vmatprep.subr.mxu0 0.0
    %112 = vmatpush1.msra.mxu0 0.0
    %113 = vmatprep.subr.mxu0 0.0
    %114 = vmatpush1.msra.mxu0 0.0
    %115 = vmatprep.subr.mxu0 0.0
    %116 = vmatpush1.msra.mxu0 0.0
    %117 = vmatprep.subr.mxu0 0.0
    %118 = vmatpush1.msra.mxu0 0.0
    %119 = vmatprep.subr.mxu0 0.0
    %120 = vmatpush1.msra.mxu0 0.0
    %121 = vmatprep.subr.mxu0 0.0
    %122 = vmatpush1.msra.mxu0 0.0
    %123 = vmatprep.subr.mxu0 0.0
    %124 = vmatpush1.msra.mxu0 0.0
    %125 = vmatprep.subr.mxu0 0.0
    %126 = vmatpush1.msra.mxu0 0.0
    %127 = vmatprep.subr.mxu0 0.0
    %128 = vmatpush1.msra.mxu0 0.0
    %129 = vmatprep.subr.mxu0 0.0
    %130 = vmatpush1.msra.mxu0 0.0
    %131 = vmatprep.subr.mxu0 0.0
    %132 = vmatpush1.msra.mxu0 0.0
    %133 = vmatprep.subr.mxu0 0.0
    %134 = vmatpush1.msra.mxu0 0.0
    %135 = vmatprep.subr.mxu0 0.0
    %136 = vmatpush1.msra.mxu0 0.0
    %137 = vmatprep.subr.mxu0 0.0
    %138 = vmatpush1.msra.mxu0 0.0
    %139 = vmatprep.subr.mxu0 0.0
    %140 = vmatpush1.msra.mxu0 0.0
    %141 = vmatprep.subr.mxu0 0.0
    %142 = vmatpush1.msra.mxu0 0.0
    %143 = vmatprep.subr.mxu0 0.0
    %144 = vmatpush1.msra.mxu0 0.0
    %145 = vmatprep.subr.mxu0 0.0
    %146 = vmatpush1.msra.mxu0 0.0
    %147 = vmatprep.subr.mxu0 0.0
    %148 = vmatpush1.msra.mxu0 0.0
    %149 = vmatprep.subr.mxu0 0.0
    %150 = vmatpush1.msra.mxu0 0.0
    %151 = vmatprep.subr.mxu0 0.0
    %152 = vmatpush1.msra.mxu0 0.0
    %153 = vmatprep.subr.mxu0 0.0
    %154 = vmatpush1.msra.mxu0 0.0
    %155 = vmatprep.subr.mxu0 0.0
    %156 = vmatpush1.msra.mxu0 0.0
    %157 = vmatprep.mubr.f32.mxu0 0.0
    %158 = vmatmul.mubr.f32.gmra.mrb[0].mxu0 %v46
    %v159 = vpop.f32.mrb[0].mxu0
    %v160 = vadd.f32 0.0, %v159
    %v161 = vpop.f32.mrb[0].mxu0
    %162 = vmatprep.mubr.f32.mxu0 0.0
    %163 = vmatmul.mubr.f32.gmra.mrb[0].mxu0 %v49
    %v164 = vpop.f32.mrb[0].mxu0
    %v165 = vadd.f32 0.0, %v164
    %v166 = vpop.f32.mrb[0].mxu0
    %167 = vmatprep.mubr.f32.mxu0 0.0
    %168 = vmatmul.mubr.f32.gmra.mrb[0].mxu0 %v52
    %v169 = vpop.f32.mrb[0].mxu0
    %v170 = vadd.f32 0.0, %v169
    %v171 = vpop.f32.mrb[0].mxu0
    %172 = vmatprep.mubr.f32.mxu0 0.0
    %173 = vmatmul.mubr.f32.gmra.mrb[0].mxu0 %v55
    %v174 = vpop.f32.mrb[0].mxu0
    %v175 = vadd.f32 0.0, %v174
    %v176 = vpop.f32.mrb[0].mxu0
    %177 = vmatprep.mubr.f32.mxu0 0.0
    %178 = vmatmul.mubr.f32.gmra.mrb[0].mxu0 %v58
    %v179 = vpop.f32.mrb[0].mxu0
    %v180 = vadd.f32 0.0, %v179
    %v181 = vpop.f32.mrb[0].mxu0
    %182 = vmatprep.mubr.f32.mxu0 0.0
    %183 = vmatmul.mubr.f32.gmra.mrb[0].mxu0 %v61
    %v184 = vpop.f32.mrb[0].mxu0
    %v185 = vadd.f32 0.0, %v184
    %v186 = vpop.f32.mrb[0].mxu0
    %187 = vmatprep.mubr.f32.mxu0 0.0
    %188 = vmatmul.mubr.f32.gmra.mrb[0].mxu0 %v64
    %v189 = vpop.f32.mrb[0].mxu0
    %v190 = vadd.f32 0.0, %v189
    %v191 = vpop.f32.mrb[0].mxu0
    %192 = vmatprep.mubr.f32.mxu0 0.0
    %193 = vmatmul.mubr.f32.gmra.mrb[0].mxu0 %v67
    %v194 = vpop.f32.mrb[0].mxu0
    %v195 = vadd.f32 0.0, %v194
    %v196 = vpop.f32.mrb[0].mxu0
    %197 = vmatprep.mubr.f32.mxu0 0.0
    %198 = vmatmul.mubr.f32.gmra.mrb[0].mxu0 %v70
    %v199 = vpop.f32.mrb[0].mxu0
    %v200 = vadd.f32 0.0, %v199
    %v201 = vpop.f32.mrb[0].mxu0
    %202 = vmatprep.mubr.f32.mxu0 0.0
    %203 = vmatmul.mubr.f32.gmra.mrb[0].mxu0 %v73
    %v204 = vpop.f32.mrb[0].mxu0
    %v205 = vadd.f32 0.0, %v204
    %v206 = vpop.f32.mrb[0].mxu0
    %207 = vmatprep.mubr.f32.mxu0 0.0
    %208 = vmatmul.mubr.f32.gmra.mrb[0].mxu0 %v76
    %v209 = vpop.f32.mrb[0].mxu0
    %v210 = vadd.f32 0.0, %v209
    %v211 = vpop.f32.mrb[0].mxu0
    %212 = vmatprep.mubr.f32.mxu0 0.0
    %213 = vmatmul.mubr.f32.gmra.mrb[0].mxu0 %v79
    %v214 = vpop.f32.mrb[0].mxu0
    %v215 = vadd.f32 0.0, %v214
    %v216 = vpop.f32.mrb[0].mxu0
    %217 = vmatprep.mubr.f32.mxu0 0.0
    %218 = vmatmul.mubr.f32.gmra.mrb[0].mxu0 %v82
    %v219 = vpop.f32.mrb[0].mxu0
    %v220 = vadd.f32 0.0, %v219
    %v221 = vpop.f32.mrb[0].mxu0
    %222 = vmatprep.mubr.f32.mxu0 0.0
    %223 = vmatmul.mubr.f32.gmra.mrb[0].mxu0 %v85
    %v224 = vpop.f32.mrb[0].mxu0
    %v225 = vadd.f32 0.0, %v224
    %v226 = vpop.f32.mrb[0].mxu0
    %227 = vmatprep.mubr.f32.mxu0 0.0
    %228 = vmatmul.mubr.f32.gmra.mrb[0].mxu0 %v88
    %v229 = vpop.f32.mrb[0].mxu0
    %v230 = vadd.f32 0.0, %v229
    %v231 = vpop.f32.mrb[0].mxu0
    %232 = vmatprep.mubr.f32.mxu0 0.0
    %233 = vmatmul.mubr.f32.gmra.mrb[0].mxu0 %v91
    %v234 = vpop.f32.mrb[0].mxu0
    %v235 = vadd.f32 0.0, %v234
    %v236 = vpop.f32.mrb[0].mxu0
    %237 = vdwg.mxu0
    %v238 = vld [vmem:[%s2] sm:$0xff]
    %v239 = vld [vmem:[%s2 + $0x8] sm:$0xff]
    %v240 = vld [vmem:[%s2 + $0x10] sm:$0xff]
    %v241 = vld [vmem:[%s2 + $0x18] sm:$0xff]
    %v242 = vld [vmem:[%s2 + $0x20] sm:$0xff]
    %v243 = vld [vmem:[%s2 + $0x28] sm:$0xff]
    %v244 = vld [vmem:[%s2 + $0x30] sm:$0xff]
    %v245 = vld [vmem:[%s2 + $0x38] sm:$0xff]
    %v246 = vld [vmem:[%s2 + $0x40] sm:$0xff]
    %v247 = vld [vmem:[%s2 + $0x48] sm:$0xff]
    %v248 = vld [vmem:[%s2 + $0x50] sm:$0xff]
    %v249 = vld [vmem:[%s2 + $0x58] sm:$0xff]
    %v250 = vld [vmem:[%s2 + $0x60] sm:$0xff]
    %v251 = vld [vmem:[%s2 + $0x68] sm:$0xff]
    %v252 = vld [vmem:[%s2 + $0x70] sm:$0xff]
    %v253 = vld [vmem:[%s2 + $0x78] sm:$0xff]
    %v254 = vld [vmem:[%s3] sm:$0xff]
    %v255 = vld [vmem:[%s3 + $0x8] sm:$0xff]
    %256 = vmatprep.subr.mxu0 0.0
    %257 = vmatpush1.msra.mxu0 %v238
    %258 = vmatprep.subr.mxu0 0.0
    %259 = vmatpush1.msra.mxu0 %v239
    %260 = vmatprep.subr.mxu0 0.0
    %261 = vmatpush1.msra.mxu0 %v240
    %262 = vmatprep.subr.mxu0 0.0
    %263 = vmatpush1.msra.mxu0 %v241
    %264 = vmatprep.subr.mxu0 0.0
    %265 = vmatpush1.msra.mxu0 %v242
    %266 = vmatprep.subr.mxu0 0.0
    %267 = vmatpush1.msra.mxu0 %v243
    %268 = vmatprep.subr.mxu0 0.0
    %269 = vmatpush1.msra.mxu0 %v244
    %270 = vmatprep.subr.mxu0 0.0
    %271 = vmatpush1.msra.mxu0 %v245
    %272 = vmatprep.subr.mxu0 0.0
    %273 = vmatpush1.msra.mxu0 %v246
    %274 = vmatprep.subr.mxu0 0.0
    %275 = vmatpush1.msra.mxu0 %v247
    %276 = vmatprep.subr.mxu0 0.0
    %277 = vmatpush1.msra.mxu0 %v248
    %278 = vmatprep.subr.mxu0 0.0
    %279 = vmatpush1.msra.mxu0 %v249
    %280 = vmatprep.subr.mxu0 0.0
    %281 = vmatpush1.msra.mxu0 %v250
    %282 = vmatprep.subr.mxu0 0.0
    %283 = vmatpush1.msra.mxu0 %v251
    %284 = vmatprep.subr.mxu0 0.0
    %285 = vmatpush1.msra.mxu0 %v252
    %286 = vmatprep.subr.mxu0 0.0
    %287 = vmatpush1.msra.mxu0 %v253
    %288 = vmatprep.subr.mxu0 0.0
    %289 = vmatpush1.msra.mxu0 0.0
    %290 = vmatprep.subr.mxu0 0.0
    %291 = vmatpush1.msra.mxu0 0.0
    %292 = vmatprep.subr.mxu0 0.0
    %293 = vmatpush1.msra.mxu0 0.0
    %294 = vmatprep.subr.mxu0 0.0
    %295 = vmatpush1.msra.mxu0 0.0
    %296 = vmatprep.subr.mxu0 0.0
    %297 = vmatpush1.msra.mxu0 0.0
    %298 = vmatprep.subr.mxu0 0.0
    %299 = vmatpush1.msra.mxu0 0.0
    %300 = vmatprep.subr.mxu0 0.0
    %301 = vmatpush1.msra.mxu0 0.0
    %302 = vmatprep.subr.mxu0 0.0
    %303 = vmatpush1.msra.mxu0 0.0
    %304 = vmatprep.subr.mxu0 0.0
    %305 = vmatpush1.msra.mxu0 0.0
    %306 = vmatprep.subr.mxu0 0.0
    %307 = vmatpush1.msra.mxu0 0.0
    %308 = vmatprep.subr.mxu0 0.0
    %309 = vmatpush1.msra.mxu0 0.0
    %310 = vmatprep.subr.mxu0 0.0
    %311 = vmatpush1.msra.mxu0 0.0
    %312 = vmatprep.subr.mxu0 0.0
    %313 = vmatpush1.msra.mxu0 0.0
    %314 = vmatprep.subr.mxu0 0.0
    %315 = vmatpush1.msra.mxu0 0.0
    %316 = vmatprep.subr.mxu0 0.0
    %317 = vmatpush1.msra.mxu0 0.0
    %318 = vmatprep.subr.mxu0 0.0
    %319 = vmatpush1.msra.mxu0 0.0
    %320 = vmatprep.mubr.f32.mxu0 0.0
    %321 = vmatmul.mubr.f32.gmra.mrb[0].mxu0 %v160
    %v322 = vpop.f32.mrb[0].mxu0
    %v323 = vadd.f32 0.0, %v322
    %v324 = vpop.f32.mrb[0].mxu0
    %325 = vmatprep.mubr.f32.mxu0 0.0
    %326 = vmatmul.mubr.f32.gmra.mrb[0].mxu0 %v165
    %v327 = vpop.f32.mrb[0].mxu0
    %v328 = vadd.f32 0.0, %v327
    %v329 = vpop.f32.mrb[0].mxu0
    %330 = vmatprep.mubr.f32.mxu0 0.0
    %331 = vmatmul.mubr.f32.gmra.mrb[0].mxu0 %v170
    %v332 = vpop.f32.mrb[0].mxu0
    %v333 = vadd.f32 0.0, %v332
    %v334 = vpop.f32.mrb[0].mxu0
    %335 = vmatprep.mubr.f32.mxu0 0.0
    %336 = vmatmul.mubr.f32.gmra.mrb[0].mxu0 %v175
    %v337 = vpop.f32.mrb[0].mxu0
    %v338 = vadd.f32 0.0, %v337
    %v339 = vpop.f32.mrb[0].mxu0
    %340 = vmatprep.mubr.f32.mxu0 0.0
    %341 = vmatmul.mubr.f32.gmra.mrb[0].mxu0 %v180
    %v342 = vpop.f32.mrb[0].mxu0
    %v343 = vadd.f32 0.0, %v342
    %v344 = vpop.f32.mrb[0].mxu0
    %345 = vmatprep.mubr.f32.mxu0 0.0
    %346 = vmatmul.mubr.f32.gmra.mrb[0].mxu0 %v185
    %v347 = vpop.f32.mrb[0].mxu0
    %v348 = vadd.f32 0.0, %v347
    %v349 = vpop.f32.mrb[0].mxu0
    %350 = vmatprep.mubr.f32.mxu0 0.0
    %351 = vmatmul.mubr.f32.gmra.mrb[0].mxu0 %v190
    %v352 = vpop.f32.mrb[0].mxu0
    %v353 = vadd.f32 0.0, %v352
    %v354 = vpop.f32.mrb[0].mxu0
    %355 = vmatprep.mubr.f32.mxu0 0.0
    %356 = vmatmul.mubr.f32.gmra.mrb[0].mxu0 %v195
    %v357 = vpop.f32.mrb[0].mxu0
    %v358 = vadd.f32 0.0, %v357
    %v359 = vpop.f32.mrb[0].mxu0
    %360 = vmatprep.mubr.f32.mxu0 0.0
    %361 = vmatmul.mubr.f32.gmra.mrb[0].mxu0 %v200
    %v362 = vpop.f32.mrb[0].mxu0
    %v363 = vadd.f32 0.0, %v362
    %v364 = vpop.f32.mrb[0].mxu0
    %365 = vmatprep.mubr.f32.mxu0 0.0
    %366 = vmatmul.mubr.f32.gmra.mrb[0].mxu0 %v205
    %v367 = vpop.f32.mrb[0].mxu0
    %v368 = vadd.f32 0.0, %v367
    %v369 = vpop.f32.mrb[0].mxu0
    %370 = vmatprep.mubr.f32.mxu0 0.0
    %371 = vmatmul.mubr.f32.gmra.mrb[0].mxu0 %v210
    %v372 = vpop.f32.mrb[0].mxu0
    %v373 = vadd.f32 0.0, %v372
    %v374 = vpop.f32.mrb[0].mxu0
    %375 = vmatprep.mubr.f32.mxu0 0.0
    %376 = vmatmul.mubr.f32.gmra.mrb[0].mxu0 %v215
    %v377 = vpop.f32.mrb[0].mxu0
    %v378 = vadd.f32 0.0, %v377
    %v379 = vpop.f32.mrb[0].mxu0
    %380 = vmatprep.mubr.f32.mxu0 0.0
    %381 = vmatmul.mubr.f32.gmra.mrb[0].mxu0 %v220
    %v382 = vpop.f32.mrb[0].mxu0
    %v383 = vadd.f32 0.0, %v382
    %v384 = vpop.f32.mrb[0].mxu0
    %385 = vmatprep.mubr.f32.mxu0 0.0
    %386 = vmatmul.mubr.f32.gmra.mrb[0].mxu0 %v225
    %v387 = vpop.f32.mrb[0].mxu0
    %v388 = vadd.f32 0.0, %v387
    %v389 = vpop.f32.mrb[0].mxu0
    %390 = vmatprep.mubr.f32.mxu0 0.0
    %391 = vmatmul.mubr.f32.gmra.mrb[0].mxu0 %v230
    %v392 = vpop.f32.mrb[0].mxu0
    %v393 = vadd.f32 0.0, %v392
    %v394 = vpop.f32.mrb[0].mxu0
    %395 = vmatprep.mubr.f32.mxu0 0.0
    %396 = vmatmul.mubr.f32.gmra.mrb[0].mxu0 %v235
    %v397 = vpop.f32.mrb[0].mxu0
    %v398 = vadd.f32 0.0, %v397
    %v399 = vpop.f32.mrb[0].mxu0
    %400 = vdwg.mxu0
    %v401 = vmul.f32 %v323, 0.125
    %v402 = vmul.f32 %v328, 0.125
    %v403 = vmul.f32 %v333, 0.125
    %v404 = vmul.f32 %v338, 0.125
    %v405 = vmul.f32 %v343, 0.125
    %v406 = vmul.f32 %v348, 0.125
    %v407 = vmul.f32 %v353, 0.125
    %v408 = vmul.f32 %v358, 0.125
    %v409 = vmul.f32 %v363, 0.125
    %v410 = vmul.f32 %v368, 0.125
    %v411 = vmul.f32 %v373, 0.125
    %v412 = vmul.f32 %v378, 0.125
    %v413 = vmul.f32 %v383, 0.125
    %v414 = vmul.f32 %v388, 0.125
    %v415 = vmul.f32 %v393, 0.125
    %v416 = vmul.f32 %v398, 0.125
    %vm417 = vcmask 130048
    %v419 = vsel %vm417, %v401, 0
    %v422 = vsel %vm417, %v402, 0
    %v425 = vsel %vm417, %v403, 0
    %v428 = vsel %vm417, %v404, 0
    %v431 = vsel %vm417, %v405, 0
    %v434 = vsel %vm417, %v406, 0
    %v437 = vsel %vm417, %v407, 0
    %v440 = vsel %vm417, %v408, 0
    %v443 = vsel %vm417, %v409, 0
    %v446 = vsel %vm417, %v410, 0
    %v449 = vsel %vm417, %v411, 0
    %v452 = vsel %vm417, %v412, 0
    %v455 = vsel %vm417, %v413, 0
    %v458 = vsel %vm417, %v414, 0
    %v461 = vsel %vm417, %v415, 0
    %v464 = vsel %vm417, %v416, 0
    %466 = vmatprep.subr.mxu0 0.0
    %467 = vmatpush1.msra.mxu0 %v254
    %468 = vmatprep.subr.mxu0 0.0
    %469 = vmatpush1.msra.mxu0 %v255
    %470 = vmatprep.subr.mxu0 0.0
    %471 = vmatpush1.msra.mxu0 0.0
    %472 = vmatprep.subr.mxu0 0.0
    %473 = vmatpush1.msra.mxu0 0.0
    %474 = vmatprep.subr.mxu0 0.0
    %475 = vmatpush1.msra.mxu0 0.0
    %476 = vmatprep.subr.mxu0 0.0
    %477 = vmatpush1.msra.mxu0 0.0
    %478 = vmatprep.subr.mxu0 0.0
    %479 = vmatpush1.msra.mxu0 0.0
    %480 = vmatprep.subr.mxu0 0.0
    %481 = vmatpush1.msra.mxu0 0.0
    %482 = vmatprep.subr.mxu0 0.0
    %483 = vmatpush1.msra.mxu0 0.0
    %484 = vmatprep.subr.mxu0 0.0
    %485 = vmatpush1.msra.mxu0 0.0
    %486 = vmatprep.subr.mxu0 0.0
    %487 = vmatpush1.msra.mxu0 0.0
    %488 = vmatprep.subr.mxu0 0.0
    %489 = vmatpush1.msra.mxu0 0.0
    %490 = vmatprep.subr.mxu0 0.0
    %491 = vmatpush1.msra.mxu0 0.0
    %492 = vmatprep.subr.mxu0 0.0
    %493 = vmatpush1.msra.mxu0 0.0
    %494 = vmatprep.subr.mxu0 0.0
    %495 = vmatpush1.msra.mxu0 0.0
    %496 = vmatprep.subr.mxu0 0.0
    %497 = vmatpush1.msra.mxu0 0.0
    %498 = vmatprep.subr.mxu0 0.0
    %499 = vmatpush1.msra.mxu0 0.0
    %500 = vmatprep.subr.mxu0 0.0
    %501 = vmatpush1.msra.mxu0 0.0
    %502 = vmatprep.subr.mxu0 0.0
    %503 = vmatpush1.msra.mxu0 0.0
    %504 = vmatprep.subr.mxu0 0.0
    %505 = vmatpush1.msra.mxu0 0.0
    %506 = vmatprep.subr.mxu0 0.0
    %507 = vmatpush1.msra.mxu0 0.0
    %508 = vmatprep.subr.mxu0 0.0
    %509 = vmatpush1.msra.mxu0 0.0
    %510 = vmatprep.subr.mxu0 0.0
    %511 = vmatpush1.msra.mxu0 0.0
    %512 = vmatprep.subr.mxu0 0.0
    %513 = vmatpush1.msra.mxu0 0.0
    %514 = vmatprep.subr.mxu0 0.0
    %515 = vmatpush1.msra.mxu0 0.0
    %516 = vmatprep.subr.mxu0 0.0
    %517 = vmatpush1.msra.mxu0 0.0
    %518 = vmatprep.subr.mxu0 0.0
    %519 = vmatpush1.msra.mxu0 0.0
    %520 = vmatprep.subr.mxu0 0.0
    %521 = vmatpush1.msra.mxu0 0.0
    %522 = vmatprep.subr.mxu0 0.0
    %523 = vmatpush1.msra.mxu0 0.0
    %524 = vmatprep.subr.mxu0 0.0
    %525 = vmatpush1.msra.mxu0 0.0
    %526 = vmatprep.subr.mxu0 0.0
    %527 = vmatpush1.msra.mxu0 0.0
    %528 = vmatprep.subr.mxu0 0.0
    %529 = vmatpush1.msra.mxu0 0.0
    %530 = vmatprep.mubr.f32.mxu0 0.0
    %531 = vmatmul.mubr.f32.gmra.mrb[0].mxu0 %v419
    %v532 = vpop.f32.mrb[0].mxu0
    %v533 = vadd.f32 0.0, %v532
    %v534 = vpop.f32.mrb[0].mxu0
    %535 = vmatprep.mubr.f32.mxu0 0.0
    %536 = vmatmul.mubr.f32.gmra.mrb[0].mxu0 %v422
    %v537 = vpop.f32.mrb[0].mxu0
    %v538 = vadd.f32 0.0, %v537
    %v539 = vpop.f32.mrb[0].mxu0
    %540 = vmatprep.mubr.f32.mxu0 0.0
    %541 = vmatmul.mubr.f32.gmra.mrb[0].mxu0 %v425
    %v542 = vpop.f32.mrb[0].mxu0
    %v543 = vadd.f32 0.0, %v542
    %v544 = vpop.f32.mrb[0].mxu0
    %545 = vmatprep.mubr.f32.mxu0 0.0
    %546 = vmatmul.mubr.f32.gmra.mrb[0].mxu0 %v428
    %v547 = vpop.f32.mrb[0].mxu0
    %v548 = vadd.f32 0.0, %v547
    %v549 = vpop.f32.mrb[0].mxu0
    %550 = vmatprep.mubr.f32.mxu0 0.0
    %551 = vmatmul.mubr.f32.gmra.mrb[0].mxu0 %v431
    %v552 = vpop.f32.mrb[0].mxu0
    %v553 = vadd.f32 0.0, %v552
    %v554 = vpop.f32.mrb[0].mxu0
    %555 = vmatprep.mubr.f32.mxu0 0.0
    %556 = vmatmul.mubr.f32.gmra.mrb[0].mxu0 %v434
    %v557 = vpop.f32.mrb[0].mxu0
    %v558 = vadd.f32 0.0, %v557
    %v559 = vpop.f32.mrb[0].mxu0
    %560 = vmatprep.mubr.f32.mxu0 0.0
    %561 = vmatmul.mubr.f32.gmra.mrb[0].mxu0 %v437
    %v562 = vpop.f32.mrb[0].mxu0
    %v563 = vadd.f32 0.0, %v562
    %v564 = vpop.f32.mrb[0].mxu0
    %565 = vmatprep.mubr.f32.mxu0 0.0
    %566 = vmatmul.mubr.f32.gmra.mrb[0].mxu0 %v440
    %v567 = vpop.f32.mrb[0].mxu0
    %v568 = vadd.f32 0.0, %v567
    %v569 = vpop.f32.mrb[0].mxu0
    %570 = vmatprep.mubr.f32.mxu0 0.0
    %571 = vmatmul.mubr.f32.gmra.mrb[0].mxu0 %v443
    %v572 = vpop.f32.mrb[0].mxu0
    %v573 = vadd.f32 0.0, %v572
    %v574 = vpop.f32.mrb[0].mxu0
    %575 = vmatprep.mubr.f32.mxu0 0.0
    %576 = vmatmul.mubr.f32.gmra.mrb[0].mxu0 %v446
    %v577 = vpop.f32.mrb[0].mxu0
    %v578 = vadd.f32 0.0, %v577
    %v579 = vpop.f32.mrb[0].mxu0
    %580 = vmatprep.mubr.f32.mxu0 0.0
    %581 = vmatmul.mubr.f32.gmra.mrb[0].mxu0 %v449
    %v582 = vpop.f32.mrb[0].mxu0
    %v583 = vadd.f32 0.0, %v582
    %v584 = vpop.f32.mrb[0].mxu0
    %585 = vmatprep.mubr.f32.mxu0 0.0
    %586 = vmatmul.mubr.f32.gmra.mrb[0].mxu0 %v452
    %v587 = vpop.f32.mrb[0].mxu0
    %v588 = vadd.f32 0.0, %v587
    %v589 = vpop.f32.mrb[0].mxu0
    %590 = vmatprep.mubr.f32.mxu0 0.0
    %591 = vmatmul.mubr.f32.gmra.mrb[0].mxu0 %v455
    %v592 = vpop.f32.mrb[0].mxu0
    %v593 = vadd.f32 0.0, %v592
    %v594 = vpop.f32.mrb[0].mxu0
    %595 = vmatprep.mubr.f32.mxu0 0.0
    %596 = vmatmul.mubr.f32.gmra.mrb[0].mxu0 %v458
    %v597 = vpop.f32.mrb[0].mxu0
    %v598 = vadd.f32 0.0, %v597
    %v599 = vpop.f32.mrb[0].mxu0
    %600 = vmatprep.mubr.f32.mxu0 0.0
    %601 = vmatmul.mubr.f32.gmra.mrb[0].mxu0 %v461
    %v602 = vpop.f32.mrb[0].mxu0
    %v603 = vadd.f32 0.0, %v602
    %v604 = vpop.f32.mrb[0].mxu0
    %605 = vmatprep.mubr.f32.mxu0 0.0
    %606 = vmatmul.mubr.f32.gmra.mrb[0].mxu0 %v464
    %v607 = vpop.f32.mrb[0].mxu0
    %v608 = vadd.f32 0.0, %v607
    %v609 = vpop.f32.mrb[0].mxu0
    %610 = vdwg.mxu0
    %v611 = vsub.f32 %v160, %v533
    %v612 = vsub.f32 %v165, %v538
    %v613 = vsub.f32 %v170, %v543
    %v614 = vsub.f32 %v175, %v548
    %v615 = vsub.f32 %v180, %v553
    %v616 = vsub.f32 %v185, %v558
    %v617 = vsub.f32 %v190, %v563
    %v618 = vsub.f32 %v195, %v568
    %v619 = vsub.f32 %v200, %v573
    %v620 = vsub.f32 %v205, %v578
    %v621 = vsub.f32 %v210, %v583
    %v622 = vsub.f32 %v215, %v588
    %v623 = vsub.f32 %v220, %v593
    %v624 = vsub.f32 %v225, %v598
    %v625 = vsub.f32 %v230, %v603
    %v626 = vsub.f32 %v235, %v608
    %v627 = vmul.f32 %v611, %v611
    %v628 = vmul.f32 %v612, %v612
    %v629 = vmul.f32 %v613, %v613
    %v630 = vmul.f32 %v614, %v614
    %v631 = vmul.f32 %v615, %v615
    %v632 = vmul.f32 %v616, %v616
    %v633 = vmul.f32 %v617, %v617
    %v634 = vmul.f32 %v618, %v618
    %v635 = vmul.f32 %v619, %v619
    %v636 = vmul.f32 %v620, %v620
    %v637 = vmul.f32 %v621, %v621
    %v638 = vmul.f32 %v622, %v622
    %v639 = vmul.f32 %v623, %v623
    %v640 = vmul.f32 %v624, %v624
    %v641 = vmul.f32 %v625, %v625
    %v642 = vmul.f32 %v626, %v626
    %643 = vmatprep.subr.mxu0 0.0
    %644 = vmatpush1.msra.mxu0 %v238
    %645 = vmatprep.subr.mxu0 0.0
    %646 = vmatpush1.msra.mxu0 %v239
    %647 = vmatprep.subr.mxu0 0.0
    %648 = vmatpush1.msra.mxu0 %v240
    %649 = vmatprep.subr.mxu0 0.0
    %650 = vmatpush1.msra.mxu0 %v241
    %651 = vmatprep.subr.mxu0 0.0
    %652 = vmatpush1.msra.mxu0 %v242
    %653 = vmatprep.subr.mxu0 0.0
    %654 = vmatpush1.msra.mxu0 %v243
    %655 = vmatprep.subr.mxu0 0.0
    %656 = vmatpush1.msra.mxu0 %v244
    %657 = vmatprep.subr.mxu0 0.0
    %658 = vmatpush1.msra.mxu0 %v245
    %659 = vmatprep.subr.mxu0 0.0
    %660 = vmatpush1.msra.mxu0 %v246
    %661 = vmatprep.subr.mxu0 0.0
    %662 = vmatpush1.msra.mxu0 %v247
    %663 = vmatprep.subr.mxu0 0.0
    %664 = vmatpush1.msra.mxu0 %v248
    %665 = vmatprep.subr.mxu0 0.0
    %666 = vmatpush1.msra.mxu0 %v249
    %667 = vmatprep.subr.mxu0 0.0
    %668 = vmatpush1.msra.mxu0 %v250
    %669 = vmatprep.subr.mxu0 0.0
    %670 = vmatpush1.msra.mxu0 %v251
    %671 = vmatprep.subr.mxu0 0.0
    %672 = vmatpush1.msra.mxu0 %v252
    %673 = vmatprep.subr.mxu0 0.0
    %674 = vmatpush1.msra.mxu0 %v253
    %675 = vmatprep.subr.mxu0 0.0
    %676 = vmatpush1.msra.mxu0 0.0
    %677 = vmatprep.subr.mxu0 0.0
    %678 = vmatpush1.msra.mxu0 0.0
    %679 = vmatprep.subr.mxu0 0.0
    %680 = vmatpush1.msra.mxu0 0.0
    %681 = vmatprep.subr.mxu0 0.0
    %682 = vmatpush1.msra.mxu0 0.0
    %683 = vmatprep.subr.mxu0 0.0
    %684 = vmatpush1.msra.mxu0 0.0
    %685 = vmatprep.subr.mxu0 0.0
    %686 = vmatpush1.msra.mxu0 0.0
    %687 = vmatprep.subr.mxu0 0.0
    %688 = vmatpush1.msra.mxu0 0.0
    %689 = vmatprep.subr.mxu0 0.0
    %690 = vmatpush1.msra.mxu0 0.0
    %691 = vmatprep.subr.mxu0 0.0
    %692 = vmatpush1.msra.mxu0 0.0
    %693 = vmatprep.subr.mxu0 0.0
    %694 = vmatpush1.msra.mxu0 0.0
    %695 = vmatprep.subr.mxu0 0.0
    %696 = vmatpush1.msra.mxu0 0.0
    %697 = vmatprep.subr.mxu0 0.0
    %698 = vmatpush1.msra.mxu0 0.0
    %699 = vmatprep.subr.mxu0 0.0
    %700 = vmatpush1.msra.mxu0 0.0
    %701 = vmatprep.subr.mxu0 0.0
    %702 = vmatpush1.msra.mxu0 0.0
    %703 = vmatprep.subr.mxu0 0.0
    %704 = vmatpush1.msra.mxu0 0.0
    %705 = vmatprep.subr.mxu0 0.0
    %706 = vmatpush1.msra.mxu0 0.0
    %707 = vmatprep.mubr.f32.mxu0 0.0
    %708 = vmatmul.mubr.f32.gmra.mrb[0].mxu0 %v627
    %v709 = vpop.f32.mrb[0].mxu0
    %v710 = vadd.f32 0.0, %v709
    %v711 = vpop.f32.mrb[0].mxu0
    %712 = vmatprep.mubr.f32.mxu0 0.0
    %713 = vmatmul.mubr.f32.gmra.mrb[0].mxu0 %v628
    %v714 = vpop.f32.mrb[0].mxu0
    %v715 = vadd.f32 0.0, %v714
    %v716 = vpop.f32.mrb[0].mxu0
    %717 = vmatprep.mubr.f32.mxu0 0.0
    %718 = vmatmul.mubr.f32.gmra.mrb[0].mxu0 %v629
    %v719 = vpop.f32.mrb[0].mxu0
    %v720 = vadd.f32 0.0, %v719
    %v721 = vpop.f32.mrb[0].mxu0
    %722 = vmatprep.mubr.f32.mxu0 0.0
    %723 = vmatmul.mubr.f32.gmra.mrb[0].mxu0 %v630
    %v724 = vpop.f32.mrb[0].mxu0
    %v725 = vadd.f32 0.0, %v724
    %v726 = vpop.f32.mrb[0].mxu0
    %727 = vmatprep.mubr.f32.mxu0 0.0
    %728 = vmatmul.mubr.f32.gmra.mrb[0].mxu0 %v631
    %v729 = vpop.f32.mrb[0].mxu0
    %v730 = vadd.f32 0.0, %v729
    %v731 = vpop.f32.mrb[0].mxu0
    %732 = vmatprep.mubr.f32.mxu0 0.0
    %733 = vmatmul.mubr.f32.gmra.mrb[0].mxu0 %v632
    %v734 = vpop.f32.mrb[0].mxu0
    %v735 = vadd.f32 0.0, %v734
    %v736 = vpop.f32.mrb[0].mxu0
    %737 = vmatprep.mubr.f32.mxu0 0.0
    %738 = vmatmul.mubr.f32.gmra.mrb[0].mxu0 %v633
    %v739 = vpop.f32.mrb[0].mxu0
    %v740 = vadd.f32 0.0, %v739
    %v741 = vpop.f32.mrb[0].mxu0
    %742 = vmatprep.mubr.f32.mxu0 0.0
    %743 = vmatmul.mubr.f32.gmra.mrb[0].mxu0 %v634
    %v744 = vpop.f32.mrb[0].mxu0
    %v745 = vadd.f32 0.0, %v744
    %v746 = vpop.f32.mrb[0].mxu0
    %747 = vmatprep.mubr.f32.mxu0 0.0
    %748 = vmatmul.mubr.f32.gmra.mrb[0].mxu0 %v635
    %v749 = vpop.f32.mrb[0].mxu0
    %v750 = vadd.f32 0.0, %v749
    %v751 = vpop.f32.mrb[0].mxu0
    %752 = vmatprep.mubr.f32.mxu0 0.0
    %753 = vmatmul.mubr.f32.gmra.mrb[0].mxu0 %v636
    %v754 = vpop.f32.mrb[0].mxu0
    %v755 = vadd.f32 0.0, %v754
    %v756 = vpop.f32.mrb[0].mxu0
    %757 = vmatprep.mubr.f32.mxu0 0.0
    %758 = vmatmul.mubr.f32.gmra.mrb[0].mxu0 %v637
    %v759 = vpop.f32.mrb[0].mxu0
    %v760 = vadd.f32 0.0, %v759
    %v761 = vpop.f32.mrb[0].mxu0
    %762 = vmatprep.mubr.f32.mxu0 0.0
    %763 = vmatmul.mubr.f32.gmra.mrb[0].mxu0 %v638
    %v764 = vpop.f32.mrb[0].mxu0
    %v765 = vadd.f32 0.0, %v764
    %v766 = vpop.f32.mrb[0].mxu0
    %767 = vmatprep.mubr.f32.mxu0 0.0
    %768 = vmatmul.mubr.f32.gmra.mrb[0].mxu0 %v639
    %v769 = vpop.f32.mrb[0].mxu0
    %v770 = vadd.f32 0.0, %v769
    %v771 = vpop.f32.mrb[0].mxu0
    %772 = vmatprep.mubr.f32.mxu0 0.0
    %773 = vmatmul.mubr.f32.gmra.mrb[0].mxu0 %v640
    %v774 = vpop.f32.mrb[0].mxu0
    %v775 = vadd.f32 0.0, %v774
    %v776 = vpop.f32.mrb[0].mxu0
    %777 = vmatprep.mubr.f32.mxu0 0.0
    %778 = vmatmul.mubr.f32.gmra.mrb[0].mxu0 %v641
    %v779 = vpop.f32.mrb[0].mxu0
    %v780 = vadd.f32 0.0, %v779
    %v781 = vpop.f32.mrb[0].mxu0
    %782 = vmatprep.mubr.f32.mxu0 0.0
    %783 = vmatmul.mubr.f32.gmra.mrb[0].mxu0 %v642
    %v784 = vpop.f32.mrb[0].mxu0
    %v785 = vadd.f32 0.0, %v784
    %v786 = vpop.f32.mrb[0].mxu0
    %787 = vdwg.mxu0
    %v788 = vmul.f32 %v710, 0.125
    %v789 = vmul.f32 %v715, 0.125
    %v790 = vmul.f32 %v720, 0.125
    %v791 = vmul.f32 %v725, 0.125
    %v792 = vmul.f32 %v730, 0.125
    %v793 = vmul.f32 %v735, 0.125
    %v794 = vmul.f32 %v740, 0.125
    %v795 = vmul.f32 %v745, 0.125
    %v796 = vmul.f32 %v750, 0.125
    %v797 = vmul.f32 %v755, 0.125
    %v798 = vmul.f32 %v760, 0.125
    %v799 = vmul.f32 %v765, 0.125
    %v800 = vmul.f32 %v770, 0.125
    %v801 = vmul.f32 %v775, 0.125
    %v802 = vmul.f32 %v780, 0.125
    %v803 = vmul.f32 %v785, 0.125
    %v804 = vadd.f32 %v788, 1e-05
    %v805 = vadd.f32 %v789, 1e-05
    %v806 = vadd.f32 %v790, 1e-05
    %v807 = vadd.f32 %v791, 1e-05
    %v808 = vadd.f32 %v792, 1e-05
    %v809 = vadd.f32 %v793, 1e-05
    %v810 = vadd.f32 %v794, 1e-05
    %v811 = vadd.f32 %v795, 1e-05
    %v812 = vadd.f32 %v796, 1e-05
    %v813 = vadd.f32 %v797, 1e-05
    %v814 = vadd.f32 %v798, 1e-05
    %v815 = vadd.f32 %v799, 1e-05
    %v816 = vadd.f32 %v800, 1e-05
    %v817 = vadd.f32 %v801, 1e-05
    %v818 = vadd.f32 %v802, 1e-05
    %v819 = vadd.f32 %v803, 1e-05
    %v820 = vrsqrt.pop %v804
    %v821 = vrsqrt.pop %v805
    %v822 = vrsqrt.pop %v806
    %v823 = vrsqrt.pop %v807
    %v824 = vrsqrt.pop %v808
    %v825 = vrsqrt.pop %v809
    %v826 = vrsqrt.pop %v810
    %v827 = vrsqrt.pop %v811
    %v828 = vrsqrt.pop %v812
    %v829 = vrsqrt.pop %v813
    %v830 = vrsqrt.pop %v814
    %v831 = vrsqrt.pop %v815
    %v832 = vrsqrt.pop %v816
    %v833 = vrsqrt.pop %v817
    %v834 = vrsqrt.pop %v818
    %v835 = vrsqrt.pop %v819
    %v837 = vsel %vm417, %v820, 0
    %v840 = vsel %vm417, %v821, 0
    %v843 = vsel %vm417, %v822, 0
    %v846 = vsel %vm417, %v823, 0
    %v849 = vsel %vm417, %v824, 0
    %v852 = vsel %vm417, %v825, 0
    %v855 = vsel %vm417, %v826, 0
    %v858 = vsel %vm417, %v827, 0
    %v861 = vsel %vm417, %v828, 0
    %v864 = vsel %vm417, %v829, 0
    %v867 = vsel %vm417, %v830, 0
    %v870 = vsel %vm417, %v831, 0
    %v873 = vsel %vm417, %v832, 0
    %v876 = vsel %vm417, %v833, 0
    %v879 = vsel %vm417, %v834, 0
    %v882 = vsel %vm417, %v835, 0
    %884 = vmatprep.subr.mxu0 0.0
    %885 = vmatpush1.msra.mxu0 %v254
    %886 = vmatprep.subr.mxu0 0.0
    %887 = vmatpush1.msra.mxu0 %v255
    %888 = vmatprep.subr.mxu0 0.0
    %889 = vmatpush1.msra.mxu0 0.0
    %890 = vmatprep.subr.mxu0 0.0
    %891 = vmatpush1.msra.mxu0 0.0
    %892 = vmatprep.subr.mxu0 0.0
    %893 = vmatpush1.msra.mxu0 0.0
    %894 = vmatprep.subr.mxu0 0.0
    %895 = vmatpush1.msra.mxu0 0.0
    %896 = vmatprep.subr.mxu0 0.0
    %897 = vmatpush1.msra.mxu0 0.0
    %898 = vmatprep.subr.mxu0 0.0
    %899 = vmatpush1.msra.mxu0 0.0
    %900 = vmatprep.subr.mxu0 0.0
    %901 = vmatpush1.msra.mxu0 0.0
    %902 = vmatprep.subr.mxu0 0.0
    %903 = vmatpush1.msra.mxu0 0.0
    %904 = vmatprep.subr.mxu0 0.0
    %905 = vmatpush1.msra.mxu0 0.0
    %906 = vmatprep.subr.mxu0 0.0
    %907 = vmatpush1.msra.mxu0 0.0
    %908 = vmatprep.subr.mxu0 0.0
    %909 = vmatpush1.msra.mxu0 0.0
    %910 = vmatprep.subr.mxu0 0.0
    %911 = vmatpush1.msra.mxu0 0.0
    %912 = vmatprep.subr.mxu0 0.0
    %913 = vmatpush1.msra.mxu0 0.0
    %914 = vmatprep.subr.mxu0 0.0
    %915 = vmatpush1.msra.mxu0 0.0
    %916 = vmatprep.subr.mxu0 0.0
    %917 = vmatpush1.msra.mxu0 0.0
    %918 = vmatprep.subr.mxu0 0.0
    %919 = vmatpush1.msra.mxu0 0.0
    %920 = vmatprep.subr.mxu0 0.0
    %921 = vmatpush1.msra.mxu0 0.0
    %922 = vmatprep.subr.mxu0 0.0
    %923 = vmatpush1.msra.mxu0 0.0
    %924 = vmatprep.subr.mxu0 0.0
    %925 = vmatpush1.msra.mxu0 0.0
    %926 = vmatprep.subr.mxu0 0.0
    %927 = vmatpush1.msra.mxu0 0.0
    %928 = vmatprep.subr.mxu0 0.0
    %929 = vmatpush1.msra.mxu0 0.0
    %930 = vmatprep.subr.mxu0 0.0
    %931 = vmatpush1.msra.mxu0 0.0
    %932 = vmatprep.subr.mxu0 0.0
    %933 = vmatpush1.msra.mxu0 0.0
    %934 = vmatprep.subr.mxu0 0.0
    %935 = vmatpush1.msra.mxu0 0.0
    %936 = vmatprep.subr.mxu0 0.0
    %937 = vmatpush1.msra.mxu0 0.0
    %938 = vmatprep.subr.mxu0 0.0
    %939 = vmatpush1.msra.mxu0 0.0
    %940 = vmatprep.subr.mxu0 0.0
    %941 = vmatpush1.msra.mxu0 0.0
    %942 = vmatprep.subr.mxu0 0.0
    %943 = vmatpush1.msra.mxu0 0.0
    %944 = vmatprep.subr.mxu0 0.0
    %945 = vmatpush1.msra.mxu0 0.0
    %946 = vmatprep.subr.mxu0 0.0
    %947 = vmatpush1.msra.mxu0 0.0
    %948 = vmatprep.mubr.f32.mxu0 0.0
    %949 = vmatmul.mubr.f32.gmra.mrb[0].mxu0 %v837
    %v950 = vpop.f32.mrb[0].mxu0
    %v951 = vadd.f32 0.0, %v950
    %v952 = vpop.f32.mrb[0].mxu0
    %953 = vmatprep.mubr.f32.mxu0 0.0
    %954 = vmatmul.mubr.f32.gmra.mrb[0].mxu0 %v840
    %v955 = vpop.f32.mrb[0].mxu0
    %v956 = vadd.f32 0.0, %v955
    %v957 = vpop.f32.mrb[0].mxu0
    %958 = vmatprep.mubr.f32.mxu0 0.0
    %959 = vmatmul.mubr.f32.gmra.mrb[0].mxu0 %v843
    %v960 = vpop.f32.mrb[0].mxu0
    %v961 = vadd.f32 0.0, %v960
    %v962 = vpop.f32.mrb[0].mxu0
    %963 = vmatprep.mubr.f32.mxu0 0.0
    %964 = vmatmul.mubr.f32.gmra.mrb[0].mxu0 %v846
    %v965 = vpop.f32.mrb[0].mxu0
    %v966 = vadd.f32 0.0, %v965
    %v967 = vpop.f32.mrb[0].mxu0
    %968 = vmatprep.mubr.f32.mxu0 0.0
    %969 = vmatmul.mubr.f32.gmra.mrb[0].mxu0 %v849
    %v970 = vpop.f32.mrb[0].mxu0
    %v971 = vadd.f32 0.0, %v970
    %v972 = vpop.f32.mrb[0].mxu0
    %973 = vmatprep.mubr.f32.mxu0 0.0
    %974 = vmatmul.mubr.f32.gmra.mrb[0].mxu0 %v852
    %v975 = vpop.f32.mrb[0].mxu0
    %v976 = vadd.f32 0.0, %v975
    %v977 = vpop.f32.mrb[0].mxu0
    %978 = vmatprep.mubr.f32.mxu0 0.0
    %979 = vmatmul.mubr.f32.gmra.mrb[0].mxu0 %v855
    %v980 = vpop.f32.mrb[0].mxu0
    %v981 = vadd.f32 0.0, %v980
    %v982 = vpop.f32.mrb[0].mxu0
    %983 = vmatprep.mubr.f32.mxu0 0.0
    %984 = vmatmul.mubr.f32.gmra.mrb[0].mxu0 %v858
    %v985 = vpop.f32.mrb[0].mxu0
    %v986 = vadd.f32 0.0, %v985
    %v987 = vpop.f32.mrb[0].mxu0
    %988 = vmatprep.mubr.f32.mxu0 0.0
    %989 = vmatmul.mubr.f32.gmra.mrb[0].mxu0 %v861
    %v990 = vpop.f32.mrb[0].mxu0
    %v991 = vadd.f32 0.0, %v990
    %v992 = vpop.f32.mrb[0].mxu0
    %993 = vmatprep.mubr.f32.mxu0 0.0
    %994 = vmatmul.mubr.f32.gmra.mrb[0].mxu0 %v864
    %v995 = vpop.f32.mrb[0].mxu0
    %v996 = vadd.f32 0.0, %v995
    %v997 = vpop.f32.mrb[0].mxu0
    %998 = vmatprep.mubr.f32.mxu0 0.0
    %999 = vmatmul.mubr.f32.gmra.mrb[0].mxu0 %v867
    %v1000 = vpop.f32.mrb[0].mxu0
    %v1001 = vadd.f32 0.0, %v1000
    %v1002 = vpop.f32.mrb[0].mxu0
    %1003 = vmatprep.mubr.f32.mxu0 0.0
    %1004 = vmatmul.mubr.f32.gmra.mrb[0].mxu0 %v870
    %v1005 = vpop.f32.mrb[0].mxu0
    %v1006 = vadd.f32 0.0, %v1005
    %v1007 = vpop.f32.mrb[0].mxu0
    %1008 = vmatprep.mubr.f32.mxu0 0.0
    %1009 = vmatmul.mubr.f32.gmra.mrb[0].mxu0 %v873
    %v1010 = vpop.f32.mrb[0].mxu0
    %v1011 = vadd.f32 0.0, %v1010
    %v1012 = vpop.f32.mrb[0].mxu0
    %1013 = vmatprep.mubr.f32.mxu0 0.0
    %1014 = vmatmul.mubr.f32.gmra.mrb[0].mxu0 %v876
    %v1015 = vpop.f32.mrb[0].mxu0
    %v1016 = vadd.f32 0.0, %v1015
    %v1017 = vpop.f32.mrb[0].mxu0
    %1018 = vmatprep.mubr.f32.mxu0 0.0
    %1019 = vmatmul.mubr.f32.gmra.mrb[0].mxu0 %v879
    %v1020 = vpop.f32.mrb[0].mxu0
    %v1021 = vadd.f32 0.0, %v1020
    %v1022 = vpop.f32.mrb[0].mxu0
    %1023 = vmatprep.mubr.f32.mxu0 0.0
    %1024 = vmatmul.mubr.f32.gmra.mrb[0].mxu0 %v882
    %v1025 = vpop.f32.mrb[0].mxu0
    %v1026 = vadd.f32 0.0, %v1025
    %v1027 = vpop.f32.mrb[0].mxu0
    %1028 = vdwg.mxu0
    %v1029 = vmul.f32 %v611, %v951
    %v1030 = vmul.f32 %v612, %v956
    %v1031 = vmul.f32 %v613, %v961
    %v1032 = vmul.f32 %v614, %v966
    %v1033 = vmul.f32 %v615, %v971
    %v1034 = vmul.f32 %v616, %v976
    %v1035 = vmul.f32 %v617, %v981
    %v1036 = vmul.f32 %v618, %v986
    %v1037 = vmul.f32 %v619, %v991
    %v1038 = vmul.f32 %v620, %v996
    %v1039 = vmul.f32 %v621, %v1001
    %v1040 = vmul.f32 %v622, %v1006
    %v1041 = vmul.f32 %v623, %v1011
    %v1042 = vmul.f32 %v624, %v1016
    %v1043 = vmul.f32 %v625, %v1021
    %v1044 = vmul.f32 %v626, %v1026
    %v1045 = vld [vmem:[%s4] sm:$0x1]
    %v1047 = vlaneseq
    %v1048 = vshrl.u32 %v1047, 7
    %v1049 = vsub.s32 0, %v1048
    %v1050 = vrot.slane %v1045, %v1049
    %v1052 = vmul.f32 %v1029, %v1050
    %v1053 = vmul.f32 %v1030, %v1050
    %v1054 = vmul.f32 %v1031, %v1050
    %v1055 = vmul.f32 %v1032, %v1050
    %v1056 = vmul.f32 %v1033, %v1050
    %v1057 = vmul.f32 %v1034, %v1050
    %v1058 = vmul.f32 %v1035, %v1050
    %v1059 = vmul.f32 %v1036, %v1050
    %v1060 = vmul.f32 %v1037, %v1050
    %v1061 = vmul.f32 %v1038, %v1050
    %v1062 = vmul.f32 %v1039, %v1050
    %v1063 = vmul.f32 %v1040, %v1050
    %v1064 = vmul.f32 %v1041, %v1050
    %v1065 = vmul.f32 %v1042, %v1050
    %v1066 = vmul.f32 %v1043, %v1050
    %v1067 = vmul.f32 %v1044, %v1050
    %v1068 = vld [vmem:[%s5] sm:$0x1]
    %v1070 = vlaneseq
    %v1071 = vshrl.u32 %v1070, 7
    %v1072 = vsub.s32 0, %v1071
    %v1073 = vrot.slane %v1068, %v1072
    %v1075 = vadd.f32 %v1052, %v1073
    %v1076 = vadd.f32 %v1053, %v1073
    %v1077 = vadd.f32 %v1054, %v1073
    %v1078 = vadd.f32 %v1055, %v1073
    %v1079 = vadd.f32 %v1056, %v1073
    %v1080 = vadd.f32 %v1057, %v1073
    %v1081 = vadd.f32 %v1058, %v1073
    %v1082 = vadd.f32 %v1059, %v1073
    %v1083 = vadd.f32 %v1060, %v1073
    %v1084 = vadd.f32 %v1061, %v1073
    %v1085 = vadd.f32 %v1062, %v1073
    %v1086 = vadd.f32 %v1063, %v1073
    %v1087 = vadd.f32 %v1064, %v1073
    %v1088 = vadd.f32 %v1065, %v1073
    %v1089 = vadd.f32 %v1066, %v1073
    %v1090 = vadd.f32 %v1067, %v1073
    %1091 = vst [vmem:[#allocation2] sm:$0xff] %v1075
    %1092 = vst [vmem:[#allocation2 + $0x8] sm:$0xff] %v1076
    %1093 = vst [vmem:[#allocation2 + $0x10] sm:$0xff] %v1077
    %1094 = vst [vmem:[#allocation2 + $0x18] sm:$0xff] %v1078
    %1095 = vst [vmem:[#allocation2 + $0x20] sm:$0xff] %v1079
    %1096 = vst [vmem:[#allocation2 + $0x28] sm:$0xff] %v1080
    %1097 = vst [vmem:[#allocation2 + $0x30] sm:$0xff] %v1081
    %1098 = vst [vmem:[#allocation2 + $0x38] sm:$0xff] %v1082
    %1099 = vst [vmem:[#allocation2 + $0x40] sm:$0xff] %v1083
    %1100 = vst [vmem:[#allocation2 + $0x48] sm:$0xff] %v1084
    %1101 = vst [vmem:[#allocation2 + $0x50] sm:$0xff] %v1085
    %1102 = vst [vmem:[#allocation2 + $0x58] sm:$0xff] %v1086
    %1103 = vst [vmem:[#allocation2 + $0x60] sm:$0xff] %v1087
    %1104 = vst [vmem:[#allocation2 + $0x68] sm:$0xff] %v1088
    %1105 = vst [vmem:[#allocation2 + $0x70] sm:$0xff] %v1089
    %1106 = vst [vmem:[#allocation2 + $0x78] sm:$0xff] %v1090
    // Predicated region
    $region26: #{tpu_custom_call.1} parent=1 // pred_check
      _
    $region27: #{tpu_custom_call.1} parent=1 // pred_check_branch
      %1108 = sbr.rel (0) target = $region29
    $region28: #{tpu_custom_call.1} parent=1 // pred_region
      %s1110 = ssub.s32 2048, 2048
      %1111 = vsyncadd [#allocation3], %s1110
      %s1112 = sshll.u32 [#allocation2], 4
      %s1113 = int_to_ptr.vmem [resolvable:$true] %s1112
      %1118 = dma.vmem_to_hbm [thread:$0]  %s1113, 2048, %s6, [#allocation3], 128, 128, 8
    $region29: #{tpu_custom_call.1} parent=1 // pred_fallthru
      _
    // Predicated region
    $region30: #{tpu_custom_call.1} parent=1 // pred_check
      _
    $region31: #{tpu_custom_call.1} parent=1 // pred_check_branch
      %1120 = sbr.rel (0) target = $region33
    $region32: #{tpu_custom_call.1} parent=1 // pred_region
      %1121 = dma.done [#allocation3], 2048
    $region33: #{tpu_custom_call.1} parent=1 // pred_fallthru
      _
    %1122 = vsyncpa [#allocation3], 1

</llo_original>
